<compile_context>
chip_gen: v7x
topology: tpu7x:2x2x1
jax: 0.10.0
libtpu: 0.0.40
codegen_flags: <defaults>
</compile_context>

<pallas_src>
import jax
import jax.numpy as jnp
from jax.experimental import pallas as pl
from jax.experimental.pallas import tpu as pltpu

LATENT_DIM = 100
H1 = 128
H2 = 256
OUT = 784                  # 28 * 28

DEFAULT_BATCH_TILE = 512   # cap; actual tile picked per-batch in _choose_tile

_N_CHUNK = 256             # lane-aligned N-chunking of the third matmul
_OUT_CHUNKS = [(s, min(_N_CHUNK, OUT - s)) for s in range(0, OUT, _N_CHUNK)]
# -> [(0,256), (256,256), (512,256), (768,16)]


def _round_up(x, m):
    return ((x + m - 1) // m) * m


def _leaky_relu(x, slope=0.2):
    return jnp.where(x > 0, x, slope * x)


def _choose_tile(B, max_tile):
    """Pick (batch_tile, padded_batch).

    tb is a multiple of 8 and <= max_tile.  Preference order:
      1. at least 2 grid steps (so the single "parallel" axis can split across
         both TensorCores on v7x),
      2. minimal padded rows (padded rows are fully computed + written back),
      3. the largest tile (amortizes per-grid-step overhead).
    """
    B8 = _round_up(B, 8)
    cap = max(8, min(max_tile, B8))
    best_key, best = None, None
    for g in range(1, B8 // 8 + 1):
        tb = _round_up(-(-B8 // g), 8)
        if tb > cap:
            continue
        b_pad = _round_up(B8, tb)
        n_steps = b_pad // tb
        key = (0 if n_steps >= 2 else 1, b_pad - B, -tb)
        if best_key is None or key < best_key:
            best_key, best = key, (tb, b_pad)
    return best


def generator_kernel(z_ref, w1_ref, b1_ref, w2_ref, b2_ref, w3_ref, b3_ref,
                     o_ref):
    # Fused 3-layer MLP for one batch tile: MXU matmuls with bf16 operands and
    # f32 accumulation; VPU leaky-relu; EUP tanh; lane-dense f32 output stores.
    z = z_ref[...].astype(jnp.bfloat16)                           # (tb, 100)

    h = jnp.dot(z, w1_ref[...],
                preferred_element_type=jnp.float32) + b1_ref[...]  # (tb, 128) f32
    h = _leaky_relu(h)

    h = jnp.dot(h.astype(jnp.bfloat16), w2_ref[...],
                preferred_element_type=jnp.float32) + b2_ref[...]  # (tb, 256) f32
    h = _leaky_relu(h).astype(jnp.bfloat16)                        # (tb, 256) bf16

    # Third layer chunked along N (lane-aligned starts): small live f32 slab,
    # tanh+store of chunk k overlaps the next chunk's matmul.
    for start, size in _OUT_CHUNKS:
        acc = jnp.dot(h, w3_ref[:, start:start + size],
                      preferred_element_type=jnp.float32)          # (tb, size) f32
        acc = acc + b3_ref[:, start:start + size]
        o_ref[:, start:start + size] = jnp.tanh(acc).astype(o_ref.dtype)


def generator_forward(z, params, *, batch_tile=DEFAULT_BATCH_TILE):
    """z: (B, 100) float32 -> (B, 1, 28, 28) float32."""
    w1, b1, w2, b2, w3, b3 = params
    B = z.shape[0]

    # Weights to bf16 (small, resident in VMEM across the whole grid).
    w1_b = w1.astype(jnp.bfloat16)
    w2_b = w2.astype(jnp.bfloat16)
    w3_b = w3.astype(jnp.bfloat16)

    tb, B_pad = _choose_tile(B, batch_tile)
    z_in = z if B_pad == B else jnp.pad(z, ((0, B_pad - B), (0, 0)))
    grid = (B_pad // tb,)

    cost = pl.CostEstimate(
        flops=2 * B_pad * (LATENT_DIM * H1 + H1 * H2 + H2 * OUT),
        transcendentals=B_pad * OUT,
        bytes_accessed=(z_in.size * 4
                        + (w1_b.size + w2_b.size + w3_b.size) * 2
                        + (b1.size + b2.size + b3.size) * 4
                        + B_pad * OUT * 4),
    )

    const2 = lambda i: (0, 0)   # weights/biases: same block every step -> resident

    flat = pl.pallas_call(
        generator_kernel,
        out_shape=jax.ShapeDtypeStruct((B_pad, OUT), jnp.float32),
        grid=grid,
        in_specs=[
            pl.BlockSpec((tb, LATENT_DIM), lambda i: (i, 0)),  # z: batch-tiled
            pl.BlockSpec(w1_b.shape, const2),
            pl.BlockSpec(b1.shape, const2),
            pl.BlockSpec(w2_b.shape, const2),
            pl.BlockSpec(b2.shape, const2),
            pl.BlockSpec(w3_b.shape, const2),
            pl.BlockSpec(b3.shape, const2),
        ],
        out_specs=pl.BlockSpec((tb, OUT), lambda i: (i, 0)),
        compiler_params=pltpu.CompilerParams(
            dimension_semantics=("parallel",),        # 2 TCs on v7x; no-op elsewhere
            vmem_limit_bytes=32 * 1024 * 1024),        # covers big tiles on v5e too
        cost_estimate=cost,
    )(z_in, w1_b, b1, w2_b, b2, w3_b, b3)

    # Drop batch padding (no-op when B is a tile multiple), then match
    # PyTorch's .view(-1, 1, 28, 28).
    return flat[:B].reshape(B, 1, 28, 28)


def init_params(key):
    """Deterministic synthetic init matching nn.Linear shapes.

    Weights stored as (in_features, out_features); biases as (1, out) so they
    broadcast across the batch (sublane) axis inside the kernel.
    """
    ks = jax.random.split(key, 6)

    def linear(kw, kb, fan_in, fan_out):
        bound = 1.0 / jnp.sqrt(fan_in)
        w = jax.random.uniform(kw, (fan_in, fan_out), jnp.float32,
                               minval=-bound, maxval=bound)
        b = jax.random.uniform(kb, (1, fan_out), jnp.float32,
                               minval=-bound, maxval=bound)
        return w, b

    w1, b1 = linear(ks[0], ks[1], LATENT_DIM, H1)
    w2, b2 = linear(ks[2], ks[3], H1, H2)
    w3, b3 = linear(ks[4], ks[5], H2, OUT)
    return (w1, b1, w2, b2, w3, b3)


def reference_forward(z, params):
    """Pure-JAX reference at matching precision (bf16 matmul operands,
    f32 accumulation / elementwise) for a tight correctness check."""
    w1, b1, w2, b2, w3, b3 = params
    bf = jnp.bfloat16
    h = _leaky_relu(jnp.dot(z.astype(bf), w1.astype(bf),
                            preferred_element_type=jnp.float32) + b1)
    h = _leaky_relu(jnp.dot(h.astype(bf), w2.astype(bf),
                            preferred_element_type=jnp.float32) + b2)
    h = jnp.tanh(jnp.dot(h.astype(bf), w3.astype(bf),
                         preferred_element_type=jnp.float32) + b3)
    return h.reshape(-1, 1, 28, 28)


if __name__ == "__main__":
    key = jax.random.PRNGKey(0)
    k_param, k_z = jax.random.split(key)

    batch = 8
    params = init_params(k_param)
    z = jax.random.normal(k_z, (batch, LATENT_DIM), jnp.float32)

    out = generator_forward(z, params)
    out = jax.block_until_ready(out)

    ref = reference_forward(z, params)
    assert out.shape == (batch, 1, 28, 28), out.shape
    assert jnp.allclose(out, ref, atol=2e-3, rtol=2e-3), "mismatch vs reference"

    print("KERNEL_OK")
</pallas_src>

<mosaic_0001>
module attributes {stable_mosaic.version = 11 : i64} {
  func.func @generator_kernel(%arg0: i32, %arg1: memref<8x100xf32, #tpu.memory_space<vmem>>, %arg2: memref<100x128xbf16, #tpu.memory_space<vmem>>, %arg3: memref<1x128xf32, #tpu.memory_space<vmem>>, %arg4: memref<128x256xbf16, #tpu.memory_space<vmem>>, %arg5: memref<1x256xf32, #tpu.memory_space<vmem>>, %arg6: memref<256x784xbf16, #tpu.memory_space<vmem>>, %arg7: memref<1x784xf32, #tpu.memory_space<vmem>>, %arg8: memref<8x784xf32, #tpu.memory_space<vmem>>) attributes {dimension_semantics = [#tpu.dimension_semantics<parallel>], iteration_bounds = array<i64: 1>, scalar_prefetch = 0 : i64, scratch_operands = 0 : i64, tpu.core_type = #tpu.core_type<tc>, window_params = [{transform_indices = @transform_0, window_bounds = array<i64: 8, 100>}, {pipeline_mode = #tpu.pipeline_mode<synchronous>, transform_indices = @transform_1, window_bounds = array<i64: 100, 128>}, {pipeline_mode = #tpu.pipeline_mode<synchronous>, transform_indices = @transform_2, window_bounds = array<i64: 1, 128>}, {pipeline_mode = #tpu.pipeline_mode<synchronous>, transform_indices = @transform_3, window_bounds = array<i64: 128, 256>}, {pipeline_mode = #tpu.pipeline_mode<synchronous>, transform_indices = @transform_4, window_bounds = array<i64: 1, 256>}, {pipeline_mode = #tpu.pipeline_mode<synchronous>, transform_indices = @transform_5, window_bounds = array<i64: 256, 784>}, {pipeline_mode = #tpu.pipeline_mode<synchronous>, transform_indices = @transform_6, window_bounds = array<i64: 1, 784>}, {transform_indices = @transform_7, window_bounds = array<i64: 8, 784>}]} {
    %c0 = arith.constant 0 : index
    %c0_0 = arith.constant 0 : index
    %0 = vector.load %arg1[%c0, %c0_0] : memref<8x100xf32, #tpu.memory_space<vmem>>, vector<8x100xf32>
    %1 = arith.truncf %0 : vector<8x100xf32> to vector<8x100xbf16>
    %c0_1 = arith.constant 0 : index
    %c0_2 = arith.constant 0 : index
    %2 = vector.load %arg2[%c0_1, %c0_2] : memref<100x128xbf16, #tpu.memory_space<vmem>>, vector<100x128xbf16>
    %cst = arith.constant dense<0.000000e+00> : vector<8x128xf32>
    %3 = tpu.matmul %1, %2, %cst {dimension_numbers = #tpu.dot_dimension_numbers<[1], [0], [0], [1], [0, 0, 1, 1], [], []>} : vector<8x100xbf16>, vector<100x128xbf16>, vector<8x128xf32> -> vector<8x128xf32>
    %c0_3 = arith.constant 0 : index
    %c0_4 = arith.constant 0 : index
    %4 = vector.load %arg3[%c0_3, %c0_4] : memref<1x128xf32, #tpu.memory_space<vmem>>, vector<1x128xf32>
    %5 = vector.broadcast %4 : vector<1x128xf32> to vector<8x128xf32>
    %6 = arith.addf %3, %5 : vector<8x128xf32>
    %cst_5 = arith.constant 0.000000e+00 : f32
    %7 = vector.broadcast %cst_5 : f32 to vector<8x128xf32>
    %8 = arith.cmpf ogt, %6, %7 : vector<8x128xf32>
    %cst_6 = arith.constant 2.000000e-01 : f32
    %9 = vector.broadcast %cst_6 : f32 to vector<8x128xf32>
    %10 = arith.mulf %9, %6 : vector<8x128xf32>
    %11 = arith.select %8, %6, %10 : vector<8x128xi1>, vector<8x128xf32>
    %12 = arith.truncf %11 : vector<8x128xf32> to vector<8x128xbf16>
    %c0_7 = arith.constant 0 : index
    %c0_8 = arith.constant 0 : index
    %13 = vector.load %arg4[%c0_7, %c0_8] : memref<128x256xbf16, #tpu.memory_space<vmem>>, vector<128x256xbf16>
    %cst_9 = arith.constant dense<0.000000e+00> : vector<8x256xf32>
    %14 = tpu.matmul %12, %13, %cst_9 {dimension_numbers = #tpu.dot_dimension_numbers<[1], [0], [0], [1], [0, 0, 1, 1], [], []>} : vector<8x128xbf16>, vector<128x256xbf16>, vector<8x256xf32> -> vector<8x256xf32>
    %c0_10 = arith.constant 0 : index
    %c0_11 = arith.constant 0 : index
    %15 = vector.load %arg5[%c0_10, %c0_11] : memref<1x256xf32, #tpu.memory_space<vmem>>, vector<1x256xf32>
    %16 = vector.broadcast %15 : vector<1x256xf32> to vector<8x256xf32>
    %17 = arith.addf %14, %16 : vector<8x256xf32>
    %cst_12 = arith.constant 0.000000e+00 : f32
    %18 = vector.broadcast %cst_12 : f32 to vector<8x256xf32>
    %19 = arith.cmpf ogt, %17, %18 : vector<8x256xf32>
    %cst_13 = arith.constant 2.000000e-01 : f32
    %20 = vector.broadcast %cst_13 : f32 to vector<8x256xf32>
    %21 = arith.mulf %20, %17 : vector<8x256xf32>
    %22 = arith.select %19, %17, %21 : vector<8x256xi1>, vector<8x256xf32>
    %23 = arith.truncf %22 : vector<8x256xf32> to vector<8x256xbf16>
    %c0_14 = arith.constant 0 : index
    %c0_15 = arith.constant 0 : index
    %24 = vector.load %arg6[%c0_14, %c0_15] : memref<256x784xbf16, #tpu.memory_space<vmem>>, vector<256x256xbf16>
    %cst_16 = arith.constant dense<0.000000e+00> : vector<8x256xf32>
    %25 = tpu.matmul %23, %24, %cst_16 {dimension_numbers = #tpu.dot_dimension_numbers<[1], [0], [0], [1], [0, 0, 1, 1], [], []>} : vector<8x256xbf16>, vector<256x256xbf16>, vector<8x256xf32> -> vector<8x256xf32>
    %c0_17 = arith.constant 0 : index
    %c0_18 = arith.constant 0 : index
    %26 = vector.load %arg7[%c0_17, %c0_18] : memref<1x784xf32, #tpu.memory_space<vmem>>, vector<1x256xf32>
    %27 = vector.broadcast %26 : vector<1x256xf32> to vector<8x256xf32>
    %28 = arith.addf %25, %27 : vector<8x256xf32>
    %29 = math.tanh %28 : vector<8x256xf32>
    %c0_19 = arith.constant 0 : index
    %c0_20 = arith.constant 0 : index
    %30 = vector.load %arg8[%c0_19, %c0_20] : memref<8x784xf32, #tpu.memory_space<vmem>>, vector<8x256xf32>
    tpu.vector_store %arg8[%c0_19, %c0_20], %29 {strides = array<i32>} : memref<8x784xf32, #tpu.memory_space<vmem>>, vector<8x256xf32>,
    %c0_21 = arith.constant 0 : index
    %c256 = arith.constant 256 : index
    %31 = vector.load %arg6[%c0_21, %c256] : memref<256x784xbf16, #tpu.memory_space<vmem>>, vector<256x256xbf16>
    %cst_22 = arith.constant dense<0.000000e+00> : vector<8x256xf32>
    %32 = tpu.matmul %23, %31, %cst_22 {dimension_numbers = #tpu.dot_dimension_numbers<[1], [0], [0], [1], [0, 0, 1, 1], [], []>} : vector<8x256xbf16>, vector<256x256xbf16>, vector<8x256xf32> -> vector<8x256xf32>
    %c0_23 = arith.constant 0 : index
    %c256_24 = arith.constant 256 : index
    %33 = vector.load %arg7[%c0_23, %c256_24] : memref<1x784xf32, #tpu.memory_space<vmem>>, vector<1x256xf32>
    %34 = vector.broadcast %33 : vector<1x256xf32> to vector<8x256xf32>
    %35 = arith.addf %32, %34 : vector<8x256xf32>
    %36 = math.tanh %35 : vector<8x256xf32>
    %c0_25 = arith.constant 0 : index
    %c256_26 = arith.constant 256 : index
    %37 = vector.load %arg8[%c0_25, %c256_26] : memref<8x784xf32, #tpu.memory_space<vmem>>, vector<8x256xf32>
    tpu.vector_store %arg8[%c0_25, %c256_26], %36 {strides = array<i32>} : memref<8x784xf32, #tpu.memory_space<vmem>>, vector<8x256xf32>,
    %c0_27 = arith.constant 0 : index
    %c512 = arith.constant 512 : index
    %38 = vector.load %arg6[%c0_27, %c512] : memref<256x784xbf16, #tpu.memory_space<vmem>>, vector<256x256xbf16>
    %cst_28 = arith.constant dense<0.000000e+00> : vector<8x256xf32>
    %39 = tpu.matmul %23, %38, %cst_28 {dimension_numbers = #tpu.dot_dimension_numbers<[1], [0], [0], [1], [0, 0, 1, 1], [], []>} : vector<8x256xbf16>, vector<256x256xbf16>, vector<8x256xf32> -> vector<8x256xf32>
    %c0_29 = arith.constant 0 : index
    %c512_30 = arith.constant 512 : index
    %40 = vector.load %arg7[%c0_29, %c512_30] : memref<1x784xf32, #tpu.memory_space<vmem>>, vector<1x256xf32>
    %41 = vector.broadcast %40 : vector<1x256xf32> to vector<8x256xf32>
    %42 = arith.addf %39, %41 : vector<8x256xf32>
    %43 = math.tanh %42 : vector<8x256xf32>
    %c0_31 = arith.constant 0 : index
    %c512_32 = arith.constant 512 : index
    %44 = vector.load %arg8[%c0_31, %c512_32] : memref<8x784xf32, #tpu.memory_space<vmem>>, vector<8x256xf32>
    tpu.vector_store %arg8[%c0_31, %c512_32], %43 {strides = array<i32>} : memref<8x784xf32, #tpu.memory_space<vmem>>, vector<8x256xf32>,
    %c0_33 = arith.constant 0 : index
    %c768 = arith.constant 768 : index
    %45 = vector.load %arg6[%c0_33, %c768] : memref<256x784xbf16, #tpu.memory_space<vmem>>, vector<256x16xbf16>
    %cst_34 = arith.constant dense<0.000000e+00> : vector<8x16xf32>
    %46 = tpu.matmul %23, %45, %cst_34 {dimension_numbers = #tpu.dot_dimension_numbers<[1], [0], [0], [1], [0, 0, 1, 1], [], []>} : vector<8x256xbf16>, vector<256x16xbf16>, vector<8x16xf32> -> vector<8x16xf32>
    %c0_35 = arith.constant 0 : index
    %c768_36 = arith.constant 768 : index
    %47 = vector.load %arg7[%c0_35, %c768_36] : memref<1x784xf32, #tpu.memory_space<vmem>>, vector<1x16xf32>
    %48 = vector.broadcast %47 : vector<1x16xf32> to vector<8x16xf32>
    %49 = arith.addf %46, %48 : vector<8x16xf32>
    %50 = math.tanh %49 : vector<8x16xf32>
    %c0_37 = arith.constant 0 : index
    %c768_38 = arith.constant 768 : index
    %51 = vector.load %arg8[%c0_37, %c768_38] : memref<8x784xf32, #tpu.memory_space<vmem>>, vector<8x16xf32>
    tpu.vector_store %arg8[%c0_37, %c768_38], %50 {strides = array<i32>} : memref<8x784xf32, #tpu.memory_space<vmem>>, vector<8x16xf32>,
    return
  }
  func.func @transform_0(%arg0: i32) -> (i32, i32) {
    %c0_i32 = arith.constant 0 : i32
    %c0_i32_0 = arith.constant 0 : i32
    return %arg0, %c0_i32 : i32, i32
  }
  func.func @transform_1(%arg0: i32) -> (i32, i32) {
    %c0_i32 = arith.constant 0 : i32
    %c0_i32_0 = arith.constant 0 : i32
    %c0_i32_1 = arith.constant 0 : i32
    return %c0_i32, %c0_i32_0 : i32, i32
  }
  func.func @transform_2(%arg0: i32) -> (i32, i32) {
    %c0_i32 = arith.constant 0 : i32
    %c0_i32_0 = arith.constant 0 : i32
    %c0_i32_1 = arith.constant 0 : i32
    return %c0_i32, %c0_i32_0 : i32, i32
  }
  func.func @transform_3(%arg0: i32) -> (i32, i32) {
    %c0_i32 = arith.constant 0 : i32
    %c0_i32_0 = arith.constant 0 : i32
    %c0_i32_1 = arith.constant 0 : i32
    return %c0_i32, %c0_i32_0 : i32, i32
  }
  func.func @transform_4(%arg0: i32) -> (i32, i32) {
    %c0_i32 = arith.constant 0 : i32
    %c0_i32_0 = arith.constant 0 : i32
    %c0_i32_1 = arith.constant 0 : i32
    return %c0_i32, %c0_i32_0 : i32, i32
  }
  func.func @transform_5(%arg0: i32) -> (i32, i32) {
    %c0_i32 = arith.constant 0 : i32
    %c0_i32_0 = arith.constant 0 : i32
    %c0_i32_1 = arith.constant 0 : i32
    return %c0_i32, %c0_i32_0 : i32, i32
  }
  func.func @transform_6(%arg0: i32) -> (i32, i32) {
    %c0_i32 = arith.constant 0 : i32
    %c0_i32_0 = arith.constant 0 : i32
    %c0_i32_1 = arith.constant 0 : i32
    return %c0_i32, %c0_i32_0 : i32, i32
  }
  func.func @transform_7(%arg0: i32) -> (i32, i32) {
    %c0_i32 = arith.constant 0 : i32
    %c0_i32_0 = arith.constant 0 : i32
    return %arg0, %c0_i32 : i32, i32
  }
}

</mosaic_0001>

<llo_original>
// kernel: tpu_custom_call.1
$region0: #{tpu_custom_call.1}
  #allocation0 [shape = 'u32[]', space=smem, size = 0x4, offset = 0x4, fixed_abs, tag = 'smem constant byte address 0x4 - core index']
  #allocation1 [shape = 'u32[144,128]{1,0:T(1,128)}', space=vmem, size = 0x12000, scoped, tag = 'internal scratch']
  %s0 = inlined_call_operand.vmem [shape: f32[8,100], index: 0, kind: input, shape index: {}]
  %s1 = inlined_call_operand.vmem [shape: bf16[100,128], index: 1, kind: input, shape index: {}]
  %s2 = inlined_call_operand.vmem [shape: f32[1,128], index: 2, kind: input, shape index: {}]
  %s3 = inlined_call_operand.vmem [shape: bf16[128,256], index: 3, kind: input, shape index: {}]
  %s4 = inlined_call_operand.vmem [shape: f32[1,256], index: 4, kind: input, shape index: {}]
  %s5 = inlined_call_operand.vmem [shape: bf16[256,784], index: 5, kind: input, shape index: {}]
  %s6 = inlined_call_operand.vmem [shape: f32[1,784], index: 6, kind: input, shape index: {}]
  %s7 = inlined_call_operand.hbm [shape: f32[8,784], index: 7, kind: output, shape index: {}]
  %s8 = sld [smem:[#allocation0]]
  $region38: #{tpu_custom_call.1} parent=0
    _
  %s10 = ssub.s32 1, %s8
  %s11 = scalar_select 0, %s10, %s8
  $region1: #{tpu_custom_call.1} parent=0
    #allocation2 [shape = 'u8[28672]{0}', space=vmem, size = 0x7000, scoped, tag = 'output window, operand 0, single buffered']
    #allocation3 [shape = 's32[1]{0}', space=sflag, size = 0x4, scoped, tag = 'scoped memory for tpu_custom_call.1']
    %12 = vsyncpa [#allocation3], 0
    // Predicated region
    $region2: #{tpu_custom_call.1} parent=1 // pred_check
      _
    $region3: #{tpu_custom_call.1} parent=1 // pred_check_branch
      %14 = sbr.rel (0) target = $region5
    $region4: #{tpu_custom_call.1} parent=1 // pred_region
      _
    $region5: #{tpu_custom_call.1} parent=1 // pred_fallthru
      _
    // Predicated region
    $region6: #{tpu_custom_call.1} parent=1 // pred_check
      _
    $region7: #{tpu_custom_call.1} parent=1 // pred_check_branch
      %16 = sbr.rel (0) target = $region9
    $region8: #{tpu_custom_call.1} parent=1 // pred_region
      _
    $region9: #{tpu_custom_call.1} parent=1 // pred_fallthru
      _
    // Predicated region
    $region10: #{tpu_custom_call.1} parent=1 // pred_check
      _
    $region11: #{tpu_custom_call.1} parent=1 // pred_check_branch
      %18 = sbr.rel (0) target = $region13
    $region12: #{tpu_custom_call.1} parent=1 // pred_region
      _
    $region13: #{tpu_custom_call.1} parent=1 // pred_fallthru
      _
    // Predicated region
    $region14: #{tpu_custom_call.1} parent=1 // pred_check
      _
    $region15: #{tpu_custom_call.1} parent=1 // pred_check_branch
      %20 = sbr.rel (0) target = $region17
    $region16: #{tpu_custom_call.1} parent=1 // pred_region
      _
    $region17: #{tpu_custom_call.1} parent=1 // pred_fallthru
      _
    // Predicated region
    $region18: #{tpu_custom_call.1} parent=1 // pred_check
      _
    $region19: #{tpu_custom_call.1} parent=1 // pred_check_branch
      %22 = sbr.rel (0) target = $region21
    $region20: #{tpu_custom_call.1} parent=1 // pred_region
      _
    $region21: #{tpu_custom_call.1} parent=1 // pred_fallthru
      _
    // Predicated region
    $region22: #{tpu_custom_call.1} parent=1 // pred_check
      _
    $region23: #{tpu_custom_call.1} parent=1 // pred_check_branch
      %24 = sbr.rel (0) target = $region25
    $region24: #{tpu_custom_call.1} parent=1 // pred_region
      _
    $region25: #{tpu_custom_call.1} parent=1 // pred_fallthru
      _
    // Predicated region
    $region26: #{tpu_custom_call.1} parent=1 // pred_check
      _
    $region27: #{tpu_custom_call.1} parent=1 // pred_check_branch
      %26 = sbr.rel (0) target = $region29
    $region28: #{tpu_custom_call.1} parent=1 // pred_region
      _
    $region29: #{tpu_custom_call.1} parent=1 // pred_fallthru
      _
    %v28 = vld [vmem:[%s0] sm:$0xff]
    %v29 = vpack.c.bf16 %v28, %v28
    %v30 = vld [vmem:[%s1] sm:$0xf]
    %v31 = vld [vmem:[%s1 + $0x4] sm:$0xf]
    %v32 = vld [vmem:[%s1 + $0x8] sm:$0xf]
    %v33 = vld [vmem:[%s1 + $0xc] sm:$0xf]
    %v34 = vld [vmem:[%s1 + $0x10] sm:$0xf]
    %v35 = vld [vmem:[%s1 + $0x14] sm:$0xf]
    %v36 = vld [vmem:[%s1 + $0x18] sm:$0xf]
    %v37 = vld [vmem:[%s1 + $0x1c] sm:$0xf]
    %v38 = vld [vmem:[%s1 + $0x20] sm:$0xf]
    %v39 = vld [vmem:[%s1 + $0x24] sm:$0xf]
    %v40 = vld [vmem:[%s1 + $0x28] sm:$0xf]
    %v41 = vld [vmem:[%s1 + $0x2c] sm:$0xf]
    %v42 = vld [vmem:[%s1 + $0x30] sm:$0x3]
    %v43 = vld [vmem:[%s2] sm:$0x1]
    %v45 = vlaneseq
    %v46 = vshrl.u32 %v45, 7
    %v47 = vsub.s32 0, %v46
    %v48 = vrot.slane %v43, %v47
    %v63 = vunpack.c.l.b16 %v30
    %v64 = vunpack.c.l.b16 %v31
    %v65 = vunpack.c.l.b16 %v32
    %v66 = vunpack.c.l.b16 %v33
    %v67 = vunpack.c.l.b16 %v34
    %v68 = vunpack.c.l.b16 %v35
    %v69 = vunpack.c.l.b16 %v36
    %v70 = vunpack.c.l.b16 %v37
    %v71 = vunpack.c.l.b16 %v38
    %v72 = vunpack.c.l.b16 %v39
    %v73 = vunpack.c.l.b16 %v40
    %v74 = vunpack.c.l.b16 %v41
    %v75 = vunpack.c.l.b16 %v42
    %v76 = vpack.c.b16 %v64, %v63
    %v77 = vpack.c.b16 %v66, %v65
    %v78 = vpack.c.b16 %v68, %v67
    %v79 = vpack.c.b16 %v70, %v69
    %v80 = vpack.c.b16 %v72, %v71
    %v81 = vpack.c.b16 %v74, %v73
    %v82 = vpack.c.b16 %v75, %v75
    %vm89 = vcmask 818176
    %v91 = vsel %vm89, %v29, 0
    %vm93 = vcmask 1041408
    %v95 = vsel %vm93, %v82, 0
    %97 = vmatprep.subr.bf16.mxu0 0
    %98 = vmatpush1.bf16.msra.mxu0 %v76
    %99 = vmatprep.subr.bf16.mxu0 0
    %100 = vmatpush1.bf16.msra.mxu0 %v77
    %101 = vmatprep.subr.bf16.mxu0 0
    %102 = vmatpush1.bf16.msra.mxu0 %v78
    %103 = vmatprep.subr.bf16.mxu0 0
    %104 = vmatpush1.bf16.msra.mxu0 %v79
    %105 = vmatprep.subr.bf16.mxu0 0
    %106 = vmatpush1.bf16.msra.mxu0 %v80
    %107 = vmatprep.subr.bf16.mxu0 0
    %108 = vmatpush1.bf16.msra.mxu0 %v81
    %109 = vmatprep.subr.bf16.mxu0 0
    %110 = vmatpush1.bf16.msra.mxu0 %v95
    %111 = vmatprep.subr.bf16.mxu0 0
    %112 = vmatpush1.bf16.msra.mxu0 0
    %113 = vmatprep.subr.bf16.mxu0 0
    %114 = vmatpush1.bf16.msra.mxu0 0
    %115 = vmatprep.subr.bf16.mxu0 0
    %116 = vmatpush1.bf16.msra.mxu0 0
    %117 = vmatprep.subr.bf16.mxu0 0
    %118 = vmatpush1.bf16.msra.mxu0 0
    %119 = vmatprep.subr.bf16.mxu0 0
    %120 = vmatpush1.bf16.msra.mxu0 0
    %121 = vmatprep.subr.bf16.mxu0 0
    %122 = vmatpush1.bf16.msra.mxu0 0
    %123 = vmatprep.subr.bf16.mxu0 0
    %124 = vmatpush1.bf16.msra.mxu0 0
    %125 = vmatprep.subr.bf16.mxu0 0
    %126 = vmatpush1.bf16.msra.mxu0 0
    %127 = vmatprep.subr.bf16.mxu0 0
    %128 = vmatpush1.bf16.msra.mxu0 0
    %129 = vmatprep.mubr.bf16.mxu0 0
    %130 = vmatmul.mubr.bf16.gmra.mrb[0].mxu0 %v91
    %v131 = vpop.f32.mrb[0].mxu0
    %v132 = vadd.f32 %v48, %v131
    %v133 = vpop.f32.mrb[0].mxu0
    %v134 = vpop.f32.mrb[0].mxu0
    %v135 = vpop.f32.mrb[0].mxu0
    %136 = vdwg.mxu0
    %vm137 = vcmp.gt.f32.partialorder %v132, 0.0
    %v138 = vmul.f32 %v132, 0.2
    %v139 = vsel %vm137, %v132, %v138
    %v140 = vpack.c.bf16 %v139, %v139
    %v141 = vld [vmem:[%s3] sm:$0xff]
    %v142 = vld [vmem:[%s3 + $0x8] sm:$0xff]
    %v143 = vld [vmem:[%s3 + $0x10] sm:$0xff]
    %v144 = vld [vmem:[%s3 + $0x18] sm:$0xff]
    %v145 = vld [vmem:[%s3 + $0x20] sm:$0xff]
    %v146 = vld [vmem:[%s3 + $0x28] sm:$0xff]
    %v147 = vld [vmem:[%s3 + $0x30] sm:$0xff]
    %v148 = vld [vmem:[%s3 + $0x38] sm:$0xff]
    %v149 = vld [vmem:[%s3 + $0x40] sm:$0xff]
    %v150 = vld [vmem:[%s3 + $0x48] sm:$0xff]
    %v151 = vld [vmem:[%s3 + $0x50] sm:$0xff]
    %v152 = vld [vmem:[%s3 + $0x58] sm:$0xff]
    %v153 = vld [vmem:[%s3 + $0x60] sm:$0xff]
    %v154 = vld [vmem:[%s3 + $0x68] sm:$0xff]
    %v155 = vld [vmem:[%s3 + $0x70] sm:$0xff]
    %v156 = vld [vmem:[%s3 + $0x78] sm:$0xff]
    %v157 = vld [vmem:[%s4] sm:$0x3]
    %v159 = vlaneseq
    %v160 = vshrl.u32 %v159, 7
    %v161 = vsub.s32 0, %v160
    %v162 = vrot.slane %v157, %v161
    %v163 = vlaneseq
    %v164 = vshrl.u32 %v163, 7
    %v165 = vsub.s32 1, %v164
    %v166 = vrot.slane %v157, %v165
    %v185 = vunpack.c.l.b16 %v141
    %v186 = vunpack.c.h.b16 %v141
    %v187 = vunpack.c.l.b16 %v142
    %v188 = vunpack.c.h.b16 %v142
    %v189 = vunpack.c.l.b16 %v143
    %v190 = vunpack.c.h.b16 %v143
    %v191 = vunpack.c.l.b16 %v144
    %v192 = vunpack.c.h.b16 %v144
    %v193 = vunpack.c.l.b16 %v145
    %v194 = vunpack.c.h.b16 %v145
    %v195 = vunpack.c.l.b16 %v146
    %v196 = vunpack.c.h.b16 %v146
    %v197 = vunpack.c.l.b16 %v147
    %v198 = vunpack.c.h.b16 %v147
    %v199 = vunpack.c.l.b16 %v148
    %v200 = vunpack.c.h.b16 %v148
    %v201 = vunpack.c.l.b16 %v149
    %v202 = vunpack.c.h.b16 %v149
    %v203 = vunpack.c.l.b16 %v150
    %v204 = vunpack.c.h.b16 %v150
    %v205 = vunpack.c.l.b16 %v151
    %v206 = vunpack.c.h.b16 %v151
    %v207 = vunpack.c.l.b16 %v152
    %v208 = vunpack.c.h.b16 %v152
    %v209 = vunpack.c.l.b16 %v153
    %v210 = vunpack.c.h.b16 %v153
    %v211 = vunpack.c.l.b16 %v154
    %v212 = vunpack.c.h.b16 %v154
    %v213 = vunpack.c.l.b16 %v155
    %v214 = vunpack.c.h.b16 %v155
    %v215 = vunpack.c.l.b16 %v156
    %v216 = vunpack.c.h.b16 %v156
    %v217 = vpack.c.b16 %v187, %v185
    %v218 = vpack.c.b16 %v188, %v186
    %v219 = vpack.c.b16 %v191, %v189
    %v220 = vpack.c.b16 %v192, %v190
    %v221 = vpack.c.b16 %v195, %v193
    %v222 = vpack.c.b16 %v196, %v194
    %v223 = vpack.c.b16 %v199, %v197
    %v224 = vpack.c.b16 %v200, %v198
    %v225 = vpack.c.b16 %v203, %v201
    %v226 = vpack.c.b16 %v204, %v202
    %v227 = vpack.c.b16 %v207, %v205
    %v228 = vpack.c.b16 %v208, %v206
    %v229 = vpack.c.b16 %v211, %v209
    %v230 = vpack.c.b16 %v212, %v210
    %v231 = vpack.c.b16 %v215, %v213
    %v232 = vpack.c.b16 %v216, %v214
    %249 = vmatprep.subr.bf16.mxu0 %v218
    %250 = vmatpush1.bf16.msra.mxu0 %v217
    %251 = vmatprep.subr.bf16.mxu0 %v220
    %252 = vmatpush1.bf16.msra.mxu0 %v219
    %253 = vmatprep.subr.bf16.mxu0 %v222
    %254 = vmatpush1.bf16.msra.mxu0 %v221
    %255 = vmatprep.subr.bf16.mxu0 %v224
    %256 = vmatpush1.bf16.msra.mxu0 %v223
    %257 = vmatprep.subr.bf16.mxu0 %v226
    %258 = vmatpush1.bf16.msra.mxu0 %v225
    %259 = vmatprep.subr.bf16.mxu0 %v228
    %260 = vmatpush1.bf16.msra.mxu0 %v227
    %261 = vmatprep.subr.bf16.mxu0 %v230
    %262 = vmatpush1.bf16.msra.mxu0 %v229
    %263 = vmatprep.subr.bf16.mxu0 %v232
    %264 = vmatpush1.bf16.msra.mxu0 %v231
    %265 = vmatprep.subr.bf16.mxu0 0
    %266 = vmatpush1.bf16.msra.mxu0 0
    %267 = vmatprep.subr.bf16.mxu0 0
    %268 = vmatpush1.bf16.msra.mxu0 0
    %269 = vmatprep.subr.bf16.mxu0 0
    %270 = vmatpush1.bf16.msra.mxu0 0
    %271 = vmatprep.subr.bf16.mxu0 0
    %272 = vmatpush1.bf16.msra.mxu0 0
    %273 = vmatprep.subr.bf16.mxu0 0
    %274 = vmatpush1.bf16.msra.mxu0 0
    %275 = vmatprep.subr.bf16.mxu0 0
    %276 = vmatpush1.bf16.msra.mxu0 0
    %277 = vmatprep.subr.bf16.mxu0 0
    %278 = vmatpush1.bf16.msra.mxu0 0
    %279 = vmatprep.subr.bf16.mxu0 0
    %280 = vmatpush1.bf16.msra.mxu0 0
    %281 = vmatprep.mubr.bf16.mxu0 0
    %282 = vmatmul.mubr.bf16.gmra.mrb[0].mxu0 %v140
    %v283 = vpop.f32.mrb[0].mxu0
    %v284 = vadd.f32 %v162, %v283
    %v285 = vpop.f32.mrb[0].mxu0
    %v286 = vadd.f32 %v166, %v285
    %v287 = vpop.f32.mrb[0].mxu0
    %v288 = vpop.f32.mrb[0].mxu0
    %289 = vdwg.mxu0
    %vm290 = vcmp.gt.f32.partialorder %v284, 0.0
    %vm291 = vcmp.gt.f32.partialorder %v286, 0.0
    %v292 = vmul.f32 %v284, 0.2
    %v293 = vmul.f32 %v286, 0.2
    %v294 = vsel %vm290, %v284, %v292
    %v295 = vsel %vm291, %v286, %v293
    %v296 = vpack.c.bf16 %v294, %v294
    %v297 = vpack.c.bf16 %v295, %v295
    %v298 = vld [vmem:[%s5] sm:$0xff]
    %v299 = vld [vmem:[%s5 + $0x1c] sm:$0xff]
    %v300 = vld [vmem:[%s5 + $0x38] sm:$0xff]
    %v301 = vld [vmem:[%s5 + $0x54] sm:$0xff]
    %v302 = vld [vmem:[%s5 + $0x70] sm:$0xff]
    %v303 = vld [vmem:[%s5 + $0x8c] sm:$0xff]
    %v304 = vld [vmem:[%s5 + $0xa8] sm:$0xff]
    %v305 = vld [vmem:[%s5 + $0xc4] sm:$0xff]
    %v306 = vld [vmem:[%s5 + $0xe0] sm:$0xff]
    %v307 = vld [vmem:[%s5 + $0xfc] sm:$0xff]
    %v308 = vld [vmem:[%s5 + $0x118] sm:$0xff]
    %v309 = vld [vmem:[%s5 + $0x134] sm:$0xff]
    %v310 = vld [vmem:[%s5 + $0x150] sm:$0xff]
    %v311 = vld [vmem:[%s5 + $0x16c] sm:$0xff]
    %v312 = vld [vmem:[%s5 + $0x188] sm:$0xff]
    %v313 = vld [vmem:[%s5 + $0x1a4] sm:$0xff]
    %v314 = vld [vmem:[%s5 + $0x1c0] sm:$0xff]
    %v315 = vld [vmem:[%s5 + $0x1dc] sm:$0xff]
    %v316 = vld [vmem:[%s5 + $0x1f8] sm:$0xff]
    %v317 = vld [vmem:[%s5 + $0x214] sm:$0xff]
    %v318 = vld [vmem:[%s5 + $0x230] sm:$0xff]
    %v319 = vld [vmem:[%s5 + $0x24c] sm:$0xff]
    %v320 = vld [vmem:[%s5 + $0x268] sm:$0xff]
    %v321 = vld [vmem:[%s5 + $0x284] sm:$0xff]
    %v322 = vld [vmem:[%s5 + $0x2a0] sm:$0xff]
    %v323 = vld [vmem:[%s5 + $0x2bc] sm:$0xff]
    %v324 = vld [vmem:[%s5 + $0x2d8] sm:$0xff]
    %v325 = vld [vmem:[%s5 + $0x2f4] sm:$0xff]
    %v326 = vld [vmem:[%s5 + $0x310] sm:$0xff]
    %v327 = vld [vmem:[%s5 + $0x32c] sm:$0xff]
    %v328 = vld [vmem:[%s5 + $0x348] sm:$0xff]
    %v329 = vld [vmem:[%s5 + $0x364] sm:$0xff]
    %v330 = vld [vmem:[%s6] sm:$0x3]
    %v332 = vlaneseq
    %v333 = vshrl.u32 %v332, 7
    %v334 = vsub.s32 0, %v333
    %v335 = vrot.slane %v330, %v334
    %v336 = vlaneseq
    %v337 = vshrl.u32 %v336, 7
    %v338 = vsub.s32 1, %v337
    %v339 = vrot.slane %v330, %v338
    %v374 = vunpack.c.l.b16 %v298
    %v375 = vunpack.c.h.b16 %v298
    %v376 = vunpack.c.l.b16 %v299
    %v377 = vunpack.c.h.b16 %v299
    %v378 = vunpack.c.l.b16 %v300
    %v379 = vunpack.c.h.b16 %v300
    %v380 = vunpack.c.l.b16 %v301
    %v381 = vunpack.c.h.b16 %v301
    %v382 = vunpack.c.l.b16 %v302
    %v383 = vunpack.c.h.b16 %v302
    %v384 = vunpack.c.l.b16 %v303
    %v385 = vunpack.c.h.b16 %v303
    %v386 = vunpack.c.l.b16 %v304
    %v387 = vunpack.c.h.b16 %v304
    %v388 = vunpack.c.l.b16 %v305
    %v389 = vunpack.c.h.b16 %v305
    %v390 = vunpack.c.l.b16 %v306
    %v391 = vunpack.c.h.b16 %v306
    %v392 = vunpack.c.l.b16 %v307
    %v393 = vunpack.c.h.b16 %v307
    %v394 = vunpack.c.l.b16 %v308
    %v395 = vunpack.c.h.b16 %v308
    %v396 = vunpack.c.l.b16 %v309
    %v397 = vunpack.c.h.b16 %v309
    %v398 = vunpack.c.l.b16 %v310
    %v399 = vunpack.c.h.b16 %v310
    %v400 = vunpack.c.l.b16 %v311
    %v401 = vunpack.c.h.b16 %v311
    %v402 = vunpack.c.l.b16 %v312
    %v403 = vunpack.c.h.b16 %v312
    %v404 = vunpack.c.l.b16 %v313
    %v405 = vunpack.c.h.b16 %v313
    %v406 = vunpack.c.l.b16 %v314
    %v407 = vunpack.c.h.b16 %v314
    %v408 = vunpack.c.l.b16 %v315
    %v409 = vunpack.c.h.b16 %v315
    %v410 = vunpack.c.l.b16 %v316
    %v411 = vunpack.c.h.b16 %v316
    %v412 = vunpack.c.l.b16 %v317
    %v413 = vunpack.c.h.b16 %v317
    %v414 = vunpack.c.l.b16 %v318
    %v415 = vunpack.c.h.b16 %v318
    %v416 = vunpack.c.l.b16 %v319
    %v417 = vunpack.c.h.b16 %v319
    %v418 = vunpack.c.l.b16 %v320
    %v419 = vunpack.c.h.b16 %v320
    %v420 = vunpack.c.l.b16 %v321
    %v421 = vunpack.c.h.b16 %v321
    %v422 = vunpack.c.l.b16 %v322
    %v423 = vunpack.c.h.b16 %v322
    %v424 = vunpack.c.l.b16 %v323
    %v425 = vunpack.c.h.b16 %v323
    %v426 = vunpack.c.l.b16 %v324
    %v427 = vunpack.c.h.b16 %v324
    %v428 = vunpack.c.l.b16 %v325
    %v429 = vunpack.c.h.b16 %v325
    %v430 = vunpack.c.l.b16 %v326
    %v431 = vunpack.c.h.b16 %v326
    %v432 = vunpack.c.l.b16 %v327
    %v433 = vunpack.c.h.b16 %v327
    %v434 = vunpack.c.l.b16 %v328
    %v435 = vunpack.c.h.b16 %v328
    %v436 = vunpack.c.l.b16 %v329
    %v437 = vunpack.c.h.b16 %v329
    %v438 = vpack.c.b16 %v376, %v374
    %v439 = vpack.c.b16 %v377, %v375
    %v440 = vpack.c.b16 %v380, %v378
    %v441 = vpack.c.b16 %v381, %v379
    %v442 = vpack.c.b16 %v384, %v382
    %v443 = vpack.c.b16 %v385, %v383
    %v444 = vpack.c.b16 %v388, %v386
    %v445 = vpack.c.b16 %v389, %v387
    %v446 = vpack.c.b16 %v392, %v390
    %v447 = vpack.c.b16 %v393, %v391
    %v448 = vpack.c.b16 %v396, %v394
    %v449 = vpack.c.b16 %v397, %v395
    %v450 = vpack.c.b16 %v400, %v398
    %v451 = vpack.c.b16 %v401, %v399
    %v452 = vpack.c.b16 %v404, %v402
    %v453 = vpack.c.b16 %v405, %v403
    %v454 = vpack.c.b16 %v408, %v406
    %v455 = vpack.c.b16 %v409, %v407
    %v456 = vpack.c.b16 %v412, %v410
    %v457 = vpack.c.b16 %v413, %v411
    %v458 = vpack.c.b16 %v416, %v414
    %v459 = vpack.c.b16 %v417, %v415
    %v460 = vpack.c.b16 %v420, %v418
    %v461 = vpack.c.b16 %v421, %v419
    %v462 = vpack.c.b16 %v424, %v422
    %v463 = vpack.c.b16 %v425, %v423
    %v464 = vpack.c.b16 %v428, %v426
    %v465 = vpack.c.b16 %v429, %v427
    %v466 = vpack.c.b16 %v432, %v430
    %v467 = vpack.c.b16 %v433, %v431
    %v468 = vpack.c.b16 %v436, %v434
    %v469 = vpack.c.b16 %v437, %v435
    %502 = vmatprep.subr.bf16.mxu0 %v439
    %503 = vmatpush1.bf16.msra.mxu0 %v438
    %504 = vmatprep.subr.bf16.mxu0 %v441
    %505 = vmatpush1.bf16.msra.mxu0 %v440
    %506 = vmatprep.subr.bf16.mxu0 %v443
    %507 = vmatpush1.bf16.msra.mxu0 %v442
    %508 = vmatprep.subr.bf16.mxu0 %v445
    %509 = vmatpush1.bf16.msra.mxu0 %v444
    %510 = vmatprep.subr.bf16.mxu0 %v447
    %511 = vmatpush1.bf16.msra.mxu0 %v446
    %512 = vmatprep.subr.bf16.mxu0 %v449
    %513 = vmatpush1.bf16.msra.mxu0 %v448
    %514 = vmatprep.subr.bf16.mxu0 %v451
    %515 = vmatpush1.bf16.msra.mxu0 %v450
    %516 = vmatprep.subr.bf16.mxu0 %v453
    %517 = vmatpush1.bf16.msra.mxu0 %v452
    %518 = vmatprep.subr.bf16.mxu0 %v455
    %519 = vmatpush1.bf16.msra.mxu0 %v454
    %520 = vmatprep.subr.bf16.mxu0 %v457
    %521 = vmatpush1.bf16.msra.mxu0 %v456
    %522 = vmatprep.subr.bf16.mxu0 %v459
    %523 = vmatpush1.bf16.msra.mxu0 %v458
    %524 = vmatprep.subr.bf16.mxu0 %v461
    %525 = vmatpush1.bf16.msra.mxu0 %v460
    %526 = vmatprep.subr.bf16.mxu0 %v463
    %527 = vmatpush1.bf16.msra.mxu0 %v462
    %528 = vmatprep.subr.bf16.mxu0 %v465
    %529 = vmatpush1.bf16.msra.mxu0 %v464
    %530 = vmatprep.subr.bf16.mxu0 %v467
    %531 = vmatpush1.bf16.msra.mxu0 %v466
    %532 = vmatprep.subr.bf16.mxu0 %v469
    %533 = vmatpush1.bf16.msra.mxu0 %v468
    %534 = vmatprep.mubr.bf16.mxu0 %v297
    %535 = vmatmul.mubr.bf16.gmra.mrb[0].mxu0 %v296
    %v536 = vpop.f32.mrb[0].mxu0
    %v537 = vadd.f32 %v335, %v536
    %v538 = vpop.f32.mrb[0].mxu0
    %v539 = vadd.f32 %v339, %v538
    %v540 = vpop.f32.mrb[0].mxu0
    %v541 = vpop.f32.mrb[0].mxu0
    %542 = vdwg.mxu0
    %v543 = vtanh.pop %v537
    %v544 = vtanh.pop %v539
    %545 = vst [vmem:[#allocation2] sm:$0xff] %v543
    %546 = vst [vmem:[#allocation2 + $0x8] sm:$0xff] %v544
    %v547 = vld [vmem:[%s5 + $0x8] sm:$0xff]
    %v548 = vld [vmem:[%s5 + $0x24] sm:$0xff]
    %v549 = vld [vmem:[%s5 + $0x40] sm:$0xff]
    %v550 = vld [vmem:[%s5 + $0x5c] sm:$0xff]
    %v551 = vld [vmem:[%s5 + $0x78] sm:$0xff]
    %v552 = vld [vmem:[%s5 + $0x94] sm:$0xff]
    %v553 = vld [vmem:[%s5 + $0xb0] sm:$0xff]
    %v554 = vld [vmem:[%s5 + $0xcc] sm:$0xff]
    %v555 = vld [vmem:[%s5 + $0xe8] sm:$0xff]
    %v556 = vld [vmem:[%s5 + $0x104] sm:$0xff]
    %v557 = vld [vmem:[%s5 + $0x120] sm:$0xff]
    %v558 = vld [vmem:[%s5 + $0x13c] sm:$0xff]
    %v559 = vld [vmem:[%s5 + $0x158] sm:$0xff]
    %v560 = vld [vmem:[%s5 + $0x174] sm:$0xff]
    %v561 = vld [vmem:[%s5 + $0x190] sm:$0xff]
    %v562 = vld [vmem:[%s5 + $0x1ac] sm:$0xff]
    %v563 = vld [vmem:[%s5 + $0x1c8] sm:$0xff]
    %v564 = vld [vmem:[%s5 + $0x1e4] sm:$0xff]
    %v565 = vld [vmem:[%s5 + $0x200] sm:$0xff]
    %v566 = vld [vmem:[%s5 + $0x21c] sm:$0xff]
    %v567 = vld [vmem:[%s5 + $0x238] sm:$0xff]
    %v568 = vld [vmem:[%s5 + $0x254] sm:$0xff]
    %v569 = vld [vmem:[%s5 + $0x270] sm:$0xff]
    %v570 = vld [vmem:[%s5 + $0x28c] sm:$0xff]
    %v571 = vld [vmem:[%s5 + $0x2a8] sm:$0xff]
    %v572 = vld [vmem:[%s5 + $0x2c4] sm:$0xff]
    %v573 = vld [vmem:[%s5 + $0x2e0] sm:$0xff]
    %v574 = vld [vmem:[%s5 + $0x2fc] sm:$0xff]
    %v575 = vld [vmem:[%s5 + $0x318] sm:$0xff]
    %v576 = vld [vmem:[%s5 + $0x334] sm:$0xff]
    %v577 = vld [vmem:[%s5 + $0x350] sm:$0xff]
    %v578 = vld [vmem:[%s5 + $0x36c] sm:$0xff]
    %v579 = vld [vmem:[%s6 + $0x2] sm:$0x3]
    %v581 = vlaneseq
    %v582 = vshrl.u32 %v581, 7
    %v583 = vsub.s32 0, %v582
    %v584 = vrot.slane %v579, %v583
    %v585 = vlaneseq
    %v586 = vshrl.u32 %v585, 7
    %v587 = vsub.s32 1, %v586
    %v588 = vrot.slane %v579, %v587
    %v623 = vunpack.c.l.b16 %v547
    %v624 = vunpack.c.h.b16 %v547
    %v625 = vunpack.c.l.b16 %v548
    %v626 = vunpack.c.h.b16 %v548
    %v627 = vunpack.c.l.b16 %v549
    %v628 = vunpack.c.h.b16 %v549
    %v629 = vunpack.c.l.b16 %v550
    %v630 = vunpack.c.h.b16 %v550
    %v631 = vunpack.c.l.b16 %v551
    %v632 = vunpack.c.h.b16 %v551
    %v633 = vunpack.c.l.b16 %v552
    %v634 = vunpack.c.h.b16 %v552
    %v635 = vunpack.c.l.b16 %v553
    %v636 = vunpack.c.h.b16 %v553
    %v637 = vunpack.c.l.b16 %v554
    %v638 = vunpack.c.h.b16 %v554
    %v639 = vunpack.c.l.b16 %v555
    %v640 = vunpack.c.h.b16 %v555
    %v641 = vunpack.c.l.b16 %v556
    %v642 = vunpack.c.h.b16 %v556
    %v643 = vunpack.c.l.b16 %v557
    %v644 = vunpack.c.h.b16 %v557
    %v645 = vunpack.c.l.b16 %v558
    %v646 = vunpack.c.h.b16 %v558
    %v647 = vunpack.c.l.b16 %v559
    %v648 = vunpack.c.h.b16 %v559
    %v649 = vunpack.c.l.b16 %v560
    %v650 = vunpack.c.h.b16 %v560
    %v651 = vunpack.c.l.b16 %v561
    %v652 = vunpack.c.h.b16 %v561
    %v653 = vunpack.c.l.b16 %v562
    %v654 = vunpack.c.h.b16 %v562
    %v655 = vunpack.c.l.b16 %v563
    %v656 = vunpack.c.h.b16 %v563
    %v657 = vunpack.c.l.b16 %v564
    %v658 = vunpack.c.h.b16 %v564
    %v659 = vunpack.c.l.b16 %v565
    %v660 = vunpack.c.h.b16 %v565
    %v661 = vunpack.c.l.b16 %v566
    %v662 = vunpack.c.h.b16 %v566
    %v663 = vunpack.c.l.b16 %v567
    %v664 = vunpack.c.h.b16 %v567
    %v665 = vunpack.c.l.b16 %v568
    %v666 = vunpack.c.h.b16 %v568
    %v667 = vunpack.c.l.b16 %v569
    %v668 = vunpack.c.h.b16 %v569
    %v669 = vunpack.c.l.b16 %v570
    %v670 = vunpack.c.h.b16 %v570
    %v671 = vunpack.c.l.b16 %v571
    %v672 = vunpack.c.h.b16 %v571
    %v673 = vunpack.c.l.b16 %v572
    %v674 = vunpack.c.h.b16 %v572
    %v675 = vunpack.c.l.b16 %v573
    %v676 = vunpack.c.h.b16 %v573
    %v677 = vunpack.c.l.b16 %v574
    %v678 = vunpack.c.h.b16 %v574
    %v679 = vunpack.c.l.b16 %v575
    %v680 = vunpack.c.h.b16 %v575
    %v681 = vunpack.c.l.b16 %v576
    %v682 = vunpack.c.h.b16 %v576
    %v683 = vunpack.c.l.b16 %v577
    %v684 = vunpack.c.h.b16 %v577
    %v685 = vunpack.c.l.b16 %v578
    %v686 = vunpack.c.h.b16 %v578
    %v687 = vpack.c.b16 %v625, %v623
    %v688 = vpack.c.b16 %v626, %v624
    %v689 = vpack.c.b16 %v629, %v627
    %v690 = vpack.c.b16 %v630, %v628
    %v691 = vpack.c.b16 %v633, %v631
    %v692 = vpack.c.b16 %v634, %v632
    %v693 = vpack.c.b16 %v637, %v635
    %v694 = vpack.c.b16 %v638, %v636
    %v695 = vpack.c.b16 %v641, %v639
    %v696 = vpack.c.b16 %v642, %v640
    %v697 = vpack.c.b16 %v645, %v643
    %v698 = vpack.c.b16 %v646, %v644
    %v699 = vpack.c.b16 %v649, %v647
    %v700 = vpack.c.b16 %v650, %v648
    %v701 = vpack.c.b16 %v653, %v651
    %v702 = vpack.c.b16 %v654, %v652
    %v703 = vpack.c.b16 %v657, %v655
    %v704 = vpack.c.b16 %v658, %v656
    %v705 = vpack.c.b16 %v661, %v659
    %v706 = vpack.c.b16 %v662, %v660
    %v707 = vpack.c.b16 %v665, %v663
    %v708 = vpack.c.b16 %v666, %v664
    %v709 = vpack.c.b16 %v669, %v667
    %v710 = vpack.c.b16 %v670, %v668
    %v711 = vpack.c.b16 %v673, %v671
    %v712 = vpack.c.b16 %v674, %v672
    %v713 = vpack.c.b16 %v677, %v675
    %v714 = vpack.c.b16 %v678, %v676
    %v715 = vpack.c.b16 %v681, %v679
    %v716 = vpack.c.b16 %v682, %v680
    %v717 = vpack.c.b16 %v685, %v683
    %v718 = vpack.c.b16 %v686, %v684
    %751 = vmatprep.subr.bf16.mxu0 %v688
    %752 = vmatpush1.bf16.msra.mxu0 %v687
    %753 = vmatprep.subr.bf16.mxu0 %v690
    %754 = vmatpush1.bf16.msra.mxu0 %v689
    %755 = vmatprep.subr.bf16.mxu0 %v692
    %756 = vmatpush1.bf16.msra.mxu0 %v691
    %757 = vmatprep.subr.bf16.mxu0 %v694
    %758 = vmatpush1.bf16.msra.mxu0 %v693
    %759 = vmatprep.subr.bf16.mxu0 %v696
    %760 = vmatpush1.bf16.msra.mxu0 %v695
    %761 = vmatprep.subr.bf16.mxu0 %v698
    %762 = vmatpush1.bf16.msra.mxu0 %v697
    %763 = vmatprep.subr.bf16.mxu0 %v700
    %764 = vmatpush1.bf16.msra.mxu0 %v699
    %765 = vmatprep.subr.bf16.mxu0 %v702
    %766 = vmatpush1.bf16.msra.mxu0 %v701
    %767 = vmatprep.subr.bf16.mxu0 %v704
    %768 = vmatpush1.bf16.msra.mxu0 %v703
    %769 = vmatprep.subr.bf16.mxu0 %v706
    %770 = vmatpush1.bf16.msra.mxu0 %v705
    %771 = vmatprep.subr.bf16.mxu0 %v708
    %772 = vmatpush1.bf16.msra.mxu0 %v707
    %773 = vmatprep.subr.bf16.mxu0 %v710
    %774 = vmatpush1.bf16.msra.mxu0 %v709
    %775 = vmatprep.subr.bf16.mxu0 %v712
    %776 = vmatpush1.bf16.msra.mxu0 %v711
    %777 = vmatprep.subr.bf16.mxu0 %v714
    %778 = vmatpush1.bf16.msra.mxu0 %v713
    %779 = vmatprep.subr.bf16.mxu0 %v716
    %780 = vmatpush1.bf16.msra.mxu0 %v715
    %781 = vmatprep.subr.bf16.mxu0 %v718
    %782 = vmatpush1.bf16.msra.mxu0 %v717
    %783 = vmatprep.mubr.bf16.mxu0 %v297
    %784 = vmatmul.mubr.bf16.gmra.mrb[0].mxu0 %v296
    %v785 = vpop.f32.mrb[0].mxu0
    %v786 = vadd.f32 %v584, %v785
    %v787 = vpop.f32.mrb[0].mxu0
    %v788 = vadd.f32 %v588, %v787
    %v789 = vpop.f32.mrb[0].mxu0
    %v790 = vpop.f32.mrb[0].mxu0
    %791 = vdwg.mxu0
    %v792 = vtanh.pop %v786
    %v793 = vtanh.pop %v788
    %794 = vst [vmem:[#allocation2 + $0x10] sm:$0xff] %v792
    %795 = vst [vmem:[#allocation2 + $0x18] sm:$0xff] %v793
    %v796 = vld [vmem:[%s5 + $0x10] sm:$0xff]
    %v797 = vld [vmem:[%s5 + $0x2c] sm:$0xff]
    %v798 = vld [vmem:[%s5 + $0x48] sm:$0xff]
    %v799 = vld [vmem:[%s5 + $0x64] sm:$0xff]
    %v800 = vld [vmem:[%s5 + $0x80] sm:$0xff]
    %v801 = vld [vmem:[%s5 + $0x9c] sm:$0xff]
    %v802 = vld [vmem:[%s5 + $0xb8] sm:$0xff]
    %v803 = vld [vmem:[%s5 + $0xd4] sm:$0xff]
    %v804 = vld [vmem:[%s5 + $0xf0] sm:$0xff]
    %v805 = vld [vmem:[%s5 + $0x10c] sm:$0xff]
    %v806 = vld [vmem:[%s5 + $0x128] sm:$0xff]
    %v807 = vld [vmem:[%s5 + $0x144] sm:$0xff]
    %v808 = vld [vmem:[%s5 + $0x160] sm:$0xff]
    %v809 = vld [vmem:[%s5 + $0x17c] sm:$0xff]
    %v810 = vld [vmem:[%s5 + $0x198] sm:$0xff]
    %v811 = vld [vmem:[%s5 + $0x1b4] sm:$0xff]
    %v812 = vld [vmem:[%s5 + $0x1d0] sm:$0xff]
    %v813 = vld [vmem:[%s5 + $0x1ec] sm:$0xff]
    %v814 = vld [vmem:[%s5 + $0x208] sm:$0xff]
    %v815 = vld [vmem:[%s5 + $0x224] sm:$0xff]
    %v816 = vld [vmem:[%s5 + $0x240] sm:$0xff]
    %v817 = vld [vmem:[%s5 + $0x25c] sm:$0xff]
    %v818 = vld [vmem:[%s5 + $0x278] sm:$0xff]
    %v819 = vld [vmem:[%s5 + $0x294] sm:$0xff]
    %v820 = vld [vmem:[%s5 + $0x2b0] sm:$0xff]
    %v821 = vld [vmem:[%s5 + $0x2cc] sm:$0xff]
    %v822 = vld [vmem:[%s5 + $0x2e8] sm:$0xff]
    %v823 = vld [vmem:[%s5 + $0x304] sm:$0xff]
    %v824 = vld [vmem:[%s5 + $0x320] sm:$0xff]
    %v825 = vld [vmem:[%s5 + $0x33c] sm:$0xff]
    %v826 = vld [vmem:[%s5 + $0x358] sm:$0xff]
    %v827 = vld [vmem:[%s5 + $0x374] sm:$0xff]
    %v828 = vld [vmem:[%s6 + $0x4] sm:$0x3]
    %v830 = vlaneseq
    %v831 = vshrl.u32 %v830, 7
    %v832 = vsub.s32 0, %v831
    %v833 = vrot.slane %v828, %v832
    %v834 = vlaneseq
    %v835 = vshrl.u32 %v834, 7
    %v836 = vsub.s32 1, %v835
    %v837 = vrot.slane %v828, %v836
    %v872 = vunpack.c.l.b16 %v796
    %v873 = vunpack.c.h.b16 %v796
    %v874 = vunpack.c.l.b16 %v797
    %v875 = vunpack.c.h.b16 %v797
    %v876 = vunpack.c.l.b16 %v798
    %v877 = vunpack.c.h.b16 %v798
    %v878 = vunpack.c.l.b16 %v799
    %v879 = vunpack.c.h.b16 %v799
    %v880 = vunpack.c.l.b16 %v800
    %v881 = vunpack.c.h.b16 %v800
    %v882 = vunpack.c.l.b16 %v801
    %v883 = vunpack.c.h.b16 %v801
    %v884 = vunpack.c.l.b16 %v802
    %v885 = vunpack.c.h.b16 %v802
    %v886 = vunpack.c.l.b16 %v803
    %v887 = vunpack.c.h.b16 %v803
    %v888 = vunpack.c.l.b16 %v804
    %v889 = vunpack.c.h.b16 %v804
    %v890 = vunpack.c.l.b16 %v805
    %v891 = vunpack.c.h.b16 %v805
    %v892 = vunpack.c.l.b16 %v806
    %v893 = vunpack.c.h.b16 %v806
    %v894 = vunpack.c.l.b16 %v807
    %v895 = vunpack.c.h.b16 %v807
    %v896 = vunpack.c.l.b16 %v808
    %v897 = vunpack.c.h.b16 %v808
    %v898 = vunpack.c.l.b16 %v809
    %v899 = vunpack.c.h.b16 %v809
    %v900 = vunpack.c.l.b16 %v810
    %v901 = vunpack.c.h.b16 %v810
    %v902 = vunpack.c.l.b16 %v811
    %v903 = vunpack.c.h.b16 %v811
    %v904 = vunpack.c.l.b16 %v812
    %v905 = vunpack.c.h.b16 %v812
    %v906 = vunpack.c.l.b16 %v813
    %v907 = vunpack.c.h.b16 %v813
    %v908 = vunpack.c.l.b16 %v814
    %v909 = vunpack.c.h.b16 %v814
    %v910 = vunpack.c.l.b16 %v815
    %v911 = vunpack.c.h.b16 %v815
    %v912 = vunpack.c.l.b16 %v816
    %v913 = vunpack.c.h.b16 %v816
    %v914 = vunpack.c.l.b16 %v817
    %v915 = vunpack.c.h.b16 %v817
    %v916 = vunpack.c.l.b16 %v818
    %v917 = vunpack.c.h.b16 %v818
    %v918 = vunpack.c.l.b16 %v819
    %v919 = vunpack.c.h.b16 %v819
    %v920 = vunpack.c.l.b16 %v820
    %v921 = vunpack.c.h.b16 %v820
    %v922 = vunpack.c.l.b16 %v821
    %v923 = vunpack.c.h.b16 %v821
    %v924 = vunpack.c.l.b16 %v822
    %v925 = vunpack.c.h.b16 %v822
    %v926 = vunpack.c.l.b16 %v823
    %v927 = vunpack.c.h.b16 %v823
    %v928 = vunpack.c.l.b16 %v824
    %v929 = vunpack.c.h.b16 %v824
    %v930 = vunpack.c.l.b16 %v825
    %v931 = vunpack.c.h.b16 %v825
    %v932 = vunpack.c.l.b16 %v826
    %v933 = vunpack.c.h.b16 %v826
    %v934 = vunpack.c.l.b16 %v827
    %v935 = vunpack.c.h.b16 %v827
    %v936 = vpack.c.b16 %v874, %v872
    %v937 = vpack.c.b16 %v875, %v873
    %v938 = vpack.c.b16 %v878, %v876
    %v939 = vpack.c.b16 %v879, %v877
    %v940 = vpack.c.b16 %v882, %v880
    %v941 = vpack.c.b16 %v883, %v881
    %v942 = vpack.c.b16 %v886, %v884
    %v943 = vpack.c.b16 %v887, %v885
    %v944 = vpack.c.b16 %v890, %v888
    %v945 = vpack.c.b16 %v891, %v889
    %v946 = vpack.c.b16 %v894, %v892
    %v947 = vpack.c.b16 %v895, %v893
    %v948 = vpack.c.b16 %v898, %v896
    %v949 = vpack.c.b16 %v899, %v897
    %v950 = vpack.c.b16 %v902, %v900
    %v951 = vpack.c.b16 %v903, %v901
    %v952 = vpack.c.b16 %v906, %v904
    %v953 = vpack.c.b16 %v907, %v905
    %v954 = vpack.c.b16 %v910, %v908
    %v955 = vpack.c.b16 %v911, %v909
    %v956 = vpack.c.b16 %v914, %v912
    %v957 = vpack.c.b16 %v915, %v913
    %v958 = vpack.c.b16 %v918, %v916
    %v959 = vpack.c.b16 %v919, %v917
    %v960 = vpack.c.b16 %v922, %v920
    %v961 = vpack.c.b16 %v923, %v921
    %v962 = vpack.c.b16 %v926, %v924
    %v963 = vpack.c.b16 %v927, %v925
    %v964 = vpack.c.b16 %v930, %v928
    %v965 = vpack.c.b16 %v931, %v929
    %v966 = vpack.c.b16 %v934, %v932
    %v967 = vpack.c.b16 %v935, %v933
    %1000 = vmatprep.subr.bf16.mxu0 %v937
    %1001 = vmatpush1.bf16.msra.mxu0 %v936
    %1002 = vmatprep.subr.bf16.mxu0 %v939
    %1003 = vmatpush1.bf16.msra.mxu0 %v938
    %1004 = vmatprep.subr.bf16.mxu0 %v941
    %1005 = vmatpush1.bf16.msra.mxu0 %v940
    %1006 = vmatprep.subr.bf16.mxu0 %v943
    %1007 = vmatpush1.bf16.msra.mxu0 %v942
    %1008 = vmatprep.subr.bf16.mxu0 %v945
    %1009 = vmatpush1.bf16.msra.mxu0 %v944
    %1010 = vmatprep.subr.bf16.mxu0 %v947
    %1011 = vmatpush1.bf16.msra.mxu0 %v946
    %1012 = vmatprep.subr.bf16.mxu0 %v949
    %1013 = vmatpush1.bf16.msra.mxu0 %v948
    %1014 = vmatprep.subr.bf16.mxu0 %v951
    %1015 = vmatpush1.bf16.msra.mxu0 %v950
    %1016 = vmatprep.subr.bf16.mxu0 %v953
    %1017 = vmatpush1.bf16.msra.mxu0 %v952
    %1018 = vmatprep.subr.bf16.mxu0 %v955
    %1019 = vmatpush1.bf16.msra.mxu0 %v954
    %1020 = vmatprep.subr.bf16.mxu0 %v957
    %1021 = vmatpush1.bf16.msra.mxu0 %v956
    %1022 = vmatprep.subr.bf16.mxu0 %v959
    %1023 = vmatpush1.bf16.msra.mxu0 %v958
    %1024 = vmatprep.subr.bf16.mxu0 %v961
    %1025 = vmatpush1.bf16.msra.mxu0 %v960
    %1026 = vmatprep.subr.bf16.mxu0 %v963
    %1027 = vmatpush1.bf16.msra.mxu0 %v962
    %1028 = vmatprep.subr.bf16.mxu0 %v965
    %1029 = vmatpush1.bf16.msra.mxu0 %v964
    %1030 = vmatprep.subr.bf16.mxu0 %v967
    %1031 = vmatpush1.bf16.msra.mxu0 %v966
    %1032 = vmatprep.mubr.bf16.mxu0 %v297
    %1033 = vmatmul.mubr.bf16.gmra.mrb[0].mxu0 %v296
    %v1034 = vpop.f32.mrb[0].mxu0
    %v1035 = vadd.f32 %v833, %v1034
    %v1036 = vpop.f32.mrb[0].mxu0
    %v1037 = vadd.f32 %v837, %v1036
    %v1038 = vpop.f32.mrb[0].mxu0
    %v1039 = vpop.f32.mrb[0].mxu0
    %1040 = vdwg.mxu0
    %v1041 = vtanh.pop %v1035
    %v1042 = vtanh.pop %v1037
    %1043 = vst [vmem:[#allocation2 + $0x20] sm:$0xff] %v1041
    %1044 = vst [vmem:[#allocation2 + $0x28] sm:$0xff] %v1042
    %v1045 = vld [vmem:[%s5 + $0x18] sm:$0xf]
    %v1046 = vld [vmem:[%s5 + $0x34] sm:$0xf]
    %v1047 = vld [vmem:[%s5 + $0x50] sm:$0xf]
    %v1048 = vld [vmem:[%s5 + $0x6c] sm:$0xf]
    %v1049 = vld [vmem:[%s5 + $0x88] sm:$0xf]
    %v1050 = vld [vmem:[%s5 + $0xa4] sm:$0xf]
    %v1051 = vld [vmem:[%s5 + $0xc0] sm:$0xf]
    %v1052 = vld [vmem:[%s5 + $0xdc] sm:$0xf]
    %v1053 = vld [vmem:[%s5 + $0xf8] sm:$0xf]
    %v1054 = vld [vmem:[%s5 + $0x114] sm:$0xf]
    %v1055 = vld [vmem:[%s5 + $0x130] sm:$0xf]
    %v1056 = vld [vmem:[%s5 + $0x14c] sm:$0xf]
    %v1057 = vld [vmem:[%s5 + $0x168] sm:$0xf]
    %v1058 = vld [vmem:[%s5 + $0x184] sm:$0xf]
    %v1059 = vld [vmem:[%s5 + $0x1a0] sm:$0xf]
    %v1060 = vld [vmem:[%s5 + $0x1bc] sm:$0xf]
    %v1061 = vld [vmem:[%s5 + $0x1d8] sm:$0xf]
    %v1062 = vld [vmem:[%s5 + $0x1f4] sm:$0xf]
    %v1063 = vld [vmem:[%s5 + $0x210] sm:$0xf]
    %v1064 = vld [vmem:[%s5 + $0x22c] sm:$0xf]
    %v1065 = vld [vmem:[%s5 + $0x248] sm:$0xf]
    %v1066 = vld [vmem:[%s5 + $0x264] sm:$0xf]
    %v1067 = vld [vmem:[%s5 + $0x280] sm:$0xf]
    %v1068 = vld [vmem:[%s5 + $0x29c] sm:$0xf]
    %v1069 = vld [vmem:[%s5 + $0x2b8] sm:$0xf]
    %v1070 = vld [vmem:[%s5 + $0x2d4] sm:$0xf]
    %v1071 = vld [vmem:[%s5 + $0x2f0] sm:$0xf]
    %v1072 = vld [vmem:[%s5 + $0x30c] sm:$0xf]
    %v1073 = vld [vmem:[%s5 + $0x328] sm:$0xf]
    %v1074 = vld [vmem:[%s5 + $0x344] sm:$0xf]
    %v1075 = vld [vmem:[%s5 + $0x360] sm:$0xf]
    %v1076 = vld [vmem:[%s5 + $0x37c] sm:$0xf]
    %v1077 = vld [vmem:[%s6 + $0x6] sm:$0x1]
    %v1079 = vlaneseq
    %v1080 = vshrl.u32 %v1079, 7
    %v1081 = vsub.s32 0, %v1080
    %v1082 = vrot.slane %v1077, %v1081
    %v1116 = vunpack.c.l.b16 %v1045
    %v1117 = vunpack.c.l.b16 %v1046
    %v1118 = vunpack.c.l.b16 %v1047
    %v1119 = vunpack.c.l.b16 %v1048
    %v1120 = vunpack.c.l.b16 %v1049
    %v1121 = vunpack.c.l.b16 %v1050
    %v1122 = vunpack.c.l.b16 %v1051
    %v1123 = vunpack.c.l.b16 %v1052
    %v1124 = vunpack.c.l.b16 %v1053
    %v1125 = vunpack.c.l.b16 %v1054
    %v1126 = vunpack.c.l.b16 %v1055
    %v1127 = vunpack.c.l.b16 %v1056
    %v1128 = vunpack.c.l.b16 %v1057
    %v1129 = vunpack.c.l.b16 %v1058
    %v1130 = vunpack.c.l.b16 %v1059
    %v1131 = vunpack.c.l.b16 %v1060
    %v1132 = vunpack.c.l.b16 %v1061
    %v1133 = vunpack.c.l.b16 %v1062
    %v1134 = vunpack.c.l.b16 %v1063
    %v1135 = vunpack.c.l.b16 %v1064
    %v1136 = vunpack.c.l.b16 %v1065
    %v1137 = vunpack.c.l.b16 %v1066
    %v1138 = vunpack.c.l.b16 %v1067
    %v1139 = vunpack.c.l.b16 %v1068
    %v1140 = vunpack.c.l.b16 %v1069
    %v1141 = vunpack.c.l.b16 %v1070
    %v1142 = vunpack.c.l.b16 %v1071
    %v1143 = vunpack.c.l.b16 %v1072
    %v1144 = vunpack.c.l.b16 %v1073
    %v1145 = vunpack.c.l.b16 %v1074
    %v1146 = vunpack.c.l.b16 %v1075
    %v1147 = vunpack.c.l.b16 %v1076
    %v1148 = vpack.c.b16 %v1117, %v1116
    %v1149 = vpack.c.b16 %v1119, %v1118
    %v1150 = vpack.c.b16 %v1121, %v1120
    %v1151 = vpack.c.b16 %v1123, %v1122
    %v1152 = vpack.c.b16 %v1125, %v1124
    %v1153 = vpack.c.b16 %v1127, %v1126
    %v1154 = vpack.c.b16 %v1129, %v1128
    %v1155 = vpack.c.b16 %v1131, %v1130
    %v1156 = vpack.c.b16 %v1133, %v1132
    %v1157 = vpack.c.b16 %v1135, %v1134
    %v1158 = vpack.c.b16 %v1137, %v1136
    %v1159 = vpack.c.b16 %v1139, %v1138
    %v1160 = vpack.c.b16 %v1141, %v1140
    %v1161 = vpack.c.b16 %v1143, %v1142
    %v1162 = vpack.c.b16 %v1145, %v1144
    %v1163 = vpack.c.b16 %v1147, %v1146
    %1180 = vmatprep.subr.bf16.mxu0 0
    %1181 = vmatpush1.bf16.msra.mxu0 %v1148
    %1182 = vmatprep.subr.bf16.mxu0 0
    %1183 = vmatpush1.bf16.msra.mxu0 %v1149
    %1184 = vmatprep.subr.bf16.mxu0 0
    %1185 = vmatpush1.bf16.msra.mxu0 %v1150
    %1186 = vmatprep.subr.bf16.mxu0 0
    %1187 = vmatpush1.bf16.msra.mxu0 %v1151
    %1188 = vmatprep.subr.bf16.mxu0 0
    %1189 = vmatpush1.bf16.msra.mxu0 %v1152
    %1190 = vmatprep.subr.bf16.mxu0 0
    %1191 = vmatpush1.bf16.msra.mxu0 %v1153
    %1192 = vmatprep.subr.bf16.mxu0 0
    %1193 = vmatpush1.bf16.msra.mxu0 %v1154
    %1194 = vmatprep.subr.bf16.mxu0 0
    %1195 = vmatpush1.bf16.msra.mxu0 %v1155
    %1196 = vmatprep.subr.bf16.mxu0 0
    %1197 = vmatpush1.bf16.msra.mxu0 %v1156
    %1198 = vmatprep.subr.bf16.mxu0 0
    %1199 = vmatpush1.bf16.msra.mxu0 %v1157
    %1200 = vmatprep.subr.bf16.mxu0 0
    %1201 = vmatpush1.bf16.msra.mxu0 %v1158
    %1202 = vmatprep.subr.bf16.mxu0 0
    %1203 = vmatpush1.bf16.msra.mxu0 %v1159
    %1204 = vmatprep.subr.bf16.mxu0 0
    %1205 = vmatpush1.bf16.msra.mxu0 %v1160
    %1206 = vmatprep.subr.bf16.mxu0 0
    %1207 = vmatpush1.bf16.msra.mxu0 %v1161
    %1208 = vmatprep.subr.bf16.mxu0 0
    %1209 = vmatpush1.bf16.msra.mxu0 %v1162
    %1210 = vmatprep.subr.bf16.mxu0 0
    %1211 = vmatpush1.bf16.msra.mxu0 %v1163
    %1212 = vmatprep.mubr.bf16.mxu0 %v297
    %1213 = vmatmul.mubr.bf16.gmra.mrb[0].mxu0 %v296
    %v1214 = vpop.f32.mrb[0].mxu0
    %v1215 = vadd.f32 %v1082, %v1214
    %v1216 = vpop.f32.mrb[0].mxu0
    %v1217 = vpop.f32.mrb[0].mxu0
    %v1218 = vpop.f32.mrb[0].mxu0
    %1219 = vdwg.mxu0
    %v1220 = vtanh.pop %v1215
    %vm1221 = vcmask 130048
    %1222 = vst.msk [vmem:[#allocation2 + $0x30] sm:$0xff] %vm1221, %v1220
    // Predicated region
    $region30: #{tpu_custom_call.1} parent=1 // pred_check
      _
    $region31: #{tpu_custom_call.1} parent=1 // pred_check_branch
      %1224 = sbr.rel (0) target = $region33
    $region32: #{tpu_custom_call.1} parent=1 // pred_region
      %s1226 = ssub.s32 896, 896
      %1227 = vsyncadd [#allocation3], %s1226
      %s1229 = sshll.u32 [#allocation2], 4
      %s1230 = int_to_ptr.vmem [resolvable:$true] %s1229
      %1232 = dma.vmem_to_hbm [thread:$0]  %s1230, 896, %s7, [#allocation3]
    $region33: #{tpu_custom_call.1} parent=1 // pred_fallthru
      _
    // Predicated region
    $region34: #{tpu_custom_call.1} parent=1 // pred_check
      _
    $region35: #{tpu_custom_call.1} parent=1 // pred_check_branch
      %1234 = sbr.rel (0) target = $region37
    $region36: #{tpu_custom_call.1} parent=1 // pred_region
      %1235 = dma.done [#allocation3], 896
    $region37: #{tpu_custom_call.1} parent=1 // pred_fallthru
      _
    %1236 = vsyncpa [#allocation3], 1

</llo_original>
